<compile_context>
chip_gen: v5e
topology: v5e:2x2
jax: 0.10.0
libtpu: 0.0.40
codegen_flags: <defaults>
</compile_context>

<pallas_src>
import jax
import jax.numpy as jnp
from jax.experimental import pallas as pl
from jax.experimental.pallas import tpu as pltpu


def _pool_kernel(len_ref, x_ref, out_ref):
    # len_ref : (1, B, 1)     int32, lengths // 2
    # x_ref   : (2*TT, B, D)  2*TT contiguous timesteps of h (one fused DMA)
    # out_ref : (TT, B, 2*D)  pooled output for the TT pairs of this block
    TT, B, two_d = out_ref.shape
    D = two_d // 2

    x = x_ref[...]                              # single contiguous load
    pairs = x.reshape(TT, 2, B, D)              # free leading-dim reshape
    even = pairs[:, 0]                          # timestep 2*p   of each pair
    odd = pairs[:, 1]                           # timestep 2*p+1 of each pair

    # pair validity: global pair index < new_length[b]
    pair_idx = (pl.program_id(0) * TT
                + jax.lax.broadcasted_iota(jnp.int32, (TT, B, 1), 0))
    valid = pair_idx < len_ref[...]             # (TT, B, 1) bool

    zero = jnp.zeros((), out_ref.dtype)
    # Two static sub-view stores (unmasked full-vreg stores when D % 128 == 0).
    out_ref[:, :, :D] = jnp.where(valid, even, zero)
    out_ref[:, :, D:] = jnp.where(valid, odd, zero)


def sequence_pooling(h, lengths):
    """h: (T, B, D) zero-padded float array, lengths: (B,) int.

    Returns (pooled_padded, new_lengths): pooled_padded has shape (T//2, B, 2*D)
    (the padded representation of the PackedSequence PyTorch returns) and
    new_lengths = lengths // 2.
    """
    T, B, D = h.shape
    T_even = (T // 2) * 2
    T_out = T_even // 2
    new_lengths = (lengths // 2).astype(jnp.int32)

    if T_out == 0:
        return jnp.zeros((0, B, 2 * D), h.dtype), new_lengths

    lens_arr = new_lengths.reshape(1, B, 1)     # tiny per-batch lengths operand

    # --- block sizing from PADDED (8,128)-tile VMEM bytes --------------------------
    itemsize = jnp.dtype(h.dtype).itemsize
    sublane = max(8, 32 // max(itemsize, 1))            # 8 f32, 16 bf16, 32 int8
    B_pad = -(-B // sublane) * sublane
    D_pad = -(-D // 128) * 128
    twoD_pad = -((-2 * D) // 128) * 128
    # padded VMEM bytes per pair: 2 input timesteps + 1 output row
    bytes_per_pair = (2 * B_pad * D_pad + B_pad * twoD_pad) * itemsize
    # ~10 MiB resident per step -> ~20 MiB double-buffered; fits the 32 MiB scoped
    # limit we request on every generation (v5e/v6e/v7x).
    target_block_bytes = 10 * 1024 * 1024
    TT_budget = max(1, target_block_bytes // max(bytes_per_pair, 1))
    # Keep >= 4 grid steps when possible: >= 2 steps per TensorCore on v7x megacore,
    # and enough steps everywhere to overlap step i's store with step i+1's load.
    TT = int(max(1, min(TT_budget, pl.cdiv(T_out, 4))))
    grid = (pl.cdiv(T_out, TT),)

    cost = pl.CostEstimate(
        flops=0,
        transcendentals=0,
        bytes_accessed=int(2 * T_even * B * D * itemsize + B * 4),
    )

    pooled = pl.pallas_call(
        _pool_kernel,
        out_shape=jax.ShapeDtypeStruct((T_out, B, 2 * D), h.dtype),
        grid=grid,
        in_specs=[
            # halved lengths, whole (tiny) array every step
            pl.BlockSpec((1, B, 1), lambda i: (0, 0, 0)),
            # 2*TT contiguous timesteps of raw h (odd T: timestep T-1 never addressed)
            pl.BlockSpec((2 * TT, B, D), lambda i: (i, 0, 0)),
        ],
        out_specs=pl.BlockSpec((TT, B, 2 * D), lambda i: (i, 0, 0)),
        compiler_params=pltpu.CompilerParams(
            dimension_semantics=("parallel",),
            vmem_limit_bytes=32 * 1024 * 1024,
        ),
        cost_estimate=cost,
    )(lens_arr, h)

    return pooled, new_lengths


if __name__ == "__main__":
    key = jax.random.PRNGKey(0)
    B, T, D = 2, 9, 32                    # odd T exercises the drop-last-step path
    # lengths sorted descending (pack requirement); the odd length 5 exercises the
    # boundary-pair masking (half-valid pair must be zeroed by the repack).
    lengths = jnp.array([9, 5], dtype=jnp.int32)

    h = jax.random.normal(key, (T, B, D), dtype=jnp.float32)
    # emulate pad_packed_sequence zero padding beyond each sequence's length
    t_idx = jnp.arange(T)[:, None, None]
    h = jnp.where(t_idx < lengths[None, :, None], h, 0.0)

    pooled, new_lengths = sequence_pooling(h, lengths)
    pooled = jax.block_until_ready(pooled)

    # pure-JAX reference of the PyTorch forward
    T_even = (T // 2) * 2
    ref = (h[:T_even]
           .transpose(1, 0, 2)                        # (B, T_even, D)
           .reshape(B, T_even // 2, 2 * D)            # pair-concat along features
           .transpose(1, 0, 2))                       # (T_even//2, B, 2D)
    mask = (jnp.arange(T_even // 2)[:, None] < (lengths // 2)[None, :])[:, :, None]
    ref = jnp.where(mask, ref, 0.0)

    assert pooled.shape == (T_even // 2, B, 2 * D)
    assert jnp.allclose(pooled, ref), "kernel output mismatch vs reference"
    assert jnp.array_equal(new_lengths, lengths // 2)
    print("KERNEL_OK")
</pallas_src>

<mosaic_0001>
module attributes {stable_mosaic.version = 11 : i64} {
  func.func @_pool_kernel(%arg0: i32, %arg1: memref<1x2x1xi32, #tpu.memory_space<vmem>>, %arg2: memref<2x2x32xf32, #tpu.memory_space<vmem>>, %arg3: memref<1x2x64xf32, #tpu.memory_space<vmem>>) attributes {dimension_semantics = [#tpu.dimension_semantics<parallel>], iteration_bounds = array<i64: 4>, scalar_prefetch = 0 : i64, scratch_operands = 0 : i64, tpu.core_type = #tpu.core_type<tc>, window_params = [{pipeline_mode = #tpu.pipeline_mode<synchronous>, transform_indices = @transform_0, window_bounds = array<i64: 1, 2, 1>}, {transform_indices = @transform_1, window_bounds = array<i64: 2, 2, 32>}, {transform_indices = @transform_2, window_bounds = array<i64: 1, 2, 64>}]} {
    %c0 = arith.constant 0 : index
    %c0_0 = arith.constant 0 : index
    %c0_1 = arith.constant 0 : index
    %0 = vector.load %arg2[%c0, %c0_0, %c0_1] : memref<2x2x32xf32, #tpu.memory_space<vmem>>, vector<2x2x32xf32>
    %1 = vector.shape_cast %0 : vector<2x2x32xf32> to vector<1x2x2x32xf32>
    %2 = vector.extract_strided_slice %1 {offsets = [0, 0, 0, 0], sizes = [1, 1, 2, 32], strides = [1, 1, 1, 1]} : vector<1x2x2x32xf32> to vector<1x1x2x32xf32>
    %3 = vector.shape_cast %2 : vector<1x1x2x32xf32> to vector<1x2x32xf32>
    %4 = vector.extract_strided_slice %1 {offsets = [0, 1, 0, 0], sizes = [1, 1, 2, 32], strides = [1, 1, 1, 1]} : vector<1x2x2x32xf32> to vector<1x1x2x32xf32>
    %5 = vector.shape_cast %4 : vector<1x1x2x32xf32> to vector<1x2x32xf32>
    %c1_i32 = arith.constant 1 : i32
    %6 = arith.muli %arg0, %c1_i32 : i32
    %7 = tpu.iota {dimensions = array<i32: 0>} : vector<1x2x1xi32>
    %8 = vector.broadcast %6 : i32 to vector<1x2x1xi32>
    %9 = arith.addi %8, %7 : vector<1x2x1xi32>
    %c0_2 = arith.constant 0 : index
    %c0_3 = arith.constant 0 : index
    %c0_4 = arith.constant 0 : index
    %10 = vector.load %arg1[%c0_2, %c0_3, %c0_4] : memref<1x2x1xi32, #tpu.memory_space<vmem>>, vector<1x2x1xi32>
    %11 = arith.cmpi slt, %9, %10 : vector<1x2x1xi32>
    %cst = arith.constant 0.000000e+00 : f32
    %12 = vector.shape_cast %11 : vector<1x2x1xi1> to vector<1x2x1xi1>
    %13 = vector.broadcast %12 : vector<1x2x1xi1> to vector<1x2x32xi1>
    %14 = vector.broadcast %cst : f32 to vector<1x2x32xf32>
    %15 = arith.select %13, %3, %14 : vector<1x2x32xi1>, vector<1x2x32xf32>
    %c0_5 = arith.constant 0 : index
    %c0_6 = arith.constant 0 : index
    %c0_7 = arith.constant 0 : index
    %16 = vector.load %arg3[%c0_5, %c0_6, %c0_7] : memref<1x2x64xf32, #tpu.memory_space<vmem>>, vector<1x2x32xf32>
    tpu.vector_store %arg3[%c0_5, %c0_6, %c0_7], %15 {strides = array<i32>} : memref<1x2x64xf32, #tpu.memory_space<vmem>>, vector<1x2x32xf32>,
    %cst_8 = arith.constant 0.000000e+00 : f32
    %17 = vector.shape_cast %11 : vector<1x2x1xi1> to vector<1x2x1xi1>
    %18 = vector.broadcast %17 : vector<1x2x1xi1> to vector<1x2x32xi1>
    %19 = vector.broadcast %cst_8 : f32 to vector<1x2x32xf32>
    %20 = arith.select %18, %5, %19 : vector<1x2x32xi1>, vector<1x2x32xf32>
    %c0_9 = arith.constant 0 : index
    %c0_10 = arith.constant 0 : index
    %c32 = arith.constant 32 : index
    %21 = vector.load %arg3[%c0_9, %c0_10, %c32] : memref<1x2x64xf32, #tpu.memory_space<vmem>>, vector<1x2x32xf32>
    tpu.vector_store %arg3[%c0_9, %c0_10, %c32], %20 {strides = array<i32>} : memref<1x2x64xf32, #tpu.memory_space<vmem>>, vector<1x2x32xf32>,
    return
  }
  func.func @transform_0(%arg0: i32) -> (i32, i32, i32) {
    %c0_i32 = arith.constant 0 : i32
    %c0_i32_0 = arith.constant 0 : i32
    %c0_i32_1 = arith.constant 0 : i32
    %c0_i32_2 = arith.constant 0 : i32
    return %c0_i32, %c0_i32_0, %c0_i32_1 : i32, i32, i32
  }
  func.func @transform_1(%arg0: i32) -> (i32, i32, i32) {
    %c0_i32 = arith.constant 0 : i32
    %c0_i32_0 = arith.constant 0 : i32
    %c0_i32_1 = arith.constant 0 : i32
    return %arg0, %c0_i32, %c0_i32_0 : i32, i32, i32
  }
  func.func @transform_2(%arg0: i32) -> (i32, i32, i32) {
    %c0_i32 = arith.constant 0 : i32
    %c0_i32_0 = arith.constant 0 : i32
    %c0_i32_1 = arith.constant 0 : i32
    return %arg0, %c0_i32, %c0_i32_0 : i32, i32, i32
  }
}

</mosaic_0001>

<llo_original>
// kernel: tpu_custom_call.1
$region0: #{tpu_custom_call.1}
  #allocation0 [shape = 'u32[]', space=smem, size = 0x4, offset = 0x4, fixed_abs, tag = 'smem constant byte address 0x4 - core index']
  #allocation1 [shape = 'u32[72,128]{1,0:T(1,128)}', space=vmem, size = 0x9000, scoped, tag = 'internal scratch']
  %s0 = inlined_call_operand.vmem [shape: s32[1,2,1], index: 0, kind: input, shape index: {}]
  %s1 = inlined_call_operand.hbm [shape: f32[9,2,32], index: 1, kind: input, shape index: {}]
  %s2 = inlined_call_operand.hbm [shape: f32[4,2,64], index: 2, kind: output, shape index: {}]
  %s3 = sld [smem:[#allocation0]]
  $region45: #{tpu_custom_call.1} parent=0
    _
  %s5 = ssub.s32 1, %s3
  %s6 = scalar_select 0, %s5, %s3
  $region1: #{tpu_custom_call.1} parent=0
    #allocation2 [shape = 'u8[4096]{0}', space=vmem, size = 0x1000, scoped, tag = 'input window, operand 1']
    #allocation3 [shape = 's32[2]{0}', space=sflag, size = 0x8, scoped, tag = 'scoped memory for tpu_custom_call.1']
    #allocation4 [shape = 's32[2]{0}', space=sflag, size = 0x8, scoped, tag = 'scoped memory for tpu_custom_call.1']
    #allocation5 [shape = 'u8[2048]{0}', space=vmem, size = 0x800, scoped, tag = 'output window, operand 0']
    %7 = vsyncpa [#allocation3], 0
    %s8 = scalar_lea.sflag [#allocation3], 1
    %9 = vsyncpa %s8, 0
    %10 = vsyncpa [#allocation4], 0
    %s11 = scalar_lea.sflag [#allocation4], 1
    %12 = vsyncpa %s11, 0
    loop: start=0, step=1, limit=6
    $region2: #{tpu_custom_call.1} parent=1 // loop_pre_header
      _
    $region3: #{tpu_custom_call.1} parent=1 // loop_header
      %s14 = sphi 0, %s18
      %p15 = scmp.ge.s32.totalorder %s14, 6
      %s22 = sphi 0, %s22
      %s24 = sphi 0, %s22
      %s25 = sphi 0, %s24
      %s39 = sphi 0, %s25
      %s45 = sphi 0, %s47
      %s48 = sphi 0, %s45
      %s49 = sphi 0, %s48
      %s65 = sphi 0, %s49
      %s71 = sphi 0, %s73
      %s74 = sphi 0, %s71
      %s75 = sphi 0, %s74
      %s91 = sphi 0, %s75
    $region4: #{tpu_custom_call.1} parent=1 // loop_header_branch
      %17 = sbr.rel (%p15) target = $region8
    $region5: #{tpu_custom_call.1} parent=1 // loop_body
      %s19 = ssub.s32 %s14, 1
      %s20 = ssub.s32 %s14, 2
      %s21 = sadd.s32 %s14, 1
      %s23 = sadd.s32 %s22, 1
      %p26 = scmp.eq.s32.totalorder %s14, 3
      %p27 = scmp.ne.s32.totalorder %s22, %s24
      %p28 = scmp.eq.s32.totalorder %s14, 0
      %p29 = por %p27, %p28
      %p30 = scmp.ne.s32.totalorder %s22, %s24
      %p31 = scmp.eq.s32.totalorder %s19, 3
      %p32 = por %p30, %p31
      %p33 = scmp.ne.s32.totalorder %s24, %s25
      %p34 = scmp.eq.s32.totalorder %s19, 0
      %p35 = por %p33, %p34
      %p36 = scmp.ne.s32.totalorder %s24, %s25
      %p37 = scmp.eq.s32.totalorder %s20, 3
      %p38 = por %p36, %p37
      %p40 = scmp.ne.s32.totalorder %s25, %s39
      %p41 = scmp.eq.s32.totalorder %s20, 0
      %p42 = por %p40, %p41
      %s43 = ssub.s32 %s14, %s21
      %p44 = scmp.eq.s32.totalorder %s43, 0
      %s46 = sadd.s32 %s45, 1
      %s47 = scalar_select %p44, %s45, %s46
      %p50 = pneg %p44
      %p51 = scmp.eq.s32.totalorder %s14, 3
      %p52 = por %p50, %p51
      %p53 = scmp.ne.s32.totalorder %s45, %s48
      %p54 = scmp.eq.s32.totalorder %s14, 0
      %p55 = por %p53, %p54
      %p56 = scmp.ne.s32.totalorder %s45, %s48
      %p57 = scmp.eq.s32.totalorder %s19, 3
      %p58 = por %p56, %p57
      %p59 = scmp.ne.s32.totalorder %s48, %s49
      %p60 = scmp.eq.s32.totalorder %s19, 0
      %p61 = por %p59, %p60
      %p62 = scmp.ne.s32.totalorder %s48, %s49
      %p63 = scmp.eq.s32.totalorder %s20, 3
      %p64 = por %p62, %p63
      %p66 = scmp.ne.s32.totalorder %s49, %s65
      %p67 = scmp.eq.s32.totalorder %s20, 0
      %p68 = por %p66, %p67
      %s69 = ssub.s32 %s14, %s21
      %p70 = scmp.eq.s32.totalorder %s69, 0
      %s72 = sadd.s32 %s71, 1
      %s73 = scalar_select %p70, %s71, %s72
      %p76 = pneg %p70
      %p77 = scmp.eq.s32.totalorder %s14, 3
      %p78 = por %p76, %p77
      %p79 = scmp.ne.s32.totalorder %s71, %s74
      %p80 = scmp.eq.s32.totalorder %s14, 0
      %p81 = por %p79, %p80
      %p82 = scmp.ne.s32.totalorder %s71, %s74
      %p83 = scmp.eq.s32.totalorder %s19, 3
      %p84 = por %p82, %p83
      %p85 = scmp.ne.s32.totalorder %s74, %s75
      %p86 = scmp.eq.s32.totalorder %s19, 0
      %p87 = por %p85, %p86
      %p88 = scmp.ne.s32.totalorder %s74, %s75
      %p89 = scmp.eq.s32.totalorder %s20, 3
      %p90 = por %p88, %p89
      %p92 = scmp.ne.s32.totalorder %s75, %s91
      %p93 = scmp.eq.s32.totalorder %s20, 0
      %p94 = por %p92, %p93
      %p95 = scmp.le.s32.totalorder 1, %s14
      %p96 = scmp.lt.s32.totalorder %s14, 5
      %p97 = pnand %p95, %p96
      %p98 = pneg %p97
      // Predicated region
      $region9: #{tpu_custom_call.1} parent=5 // pred_check
        _
      $region10: #{tpu_custom_call.1} parent=5 // pred_check_branch
        %100 = sbr.rel (%p97) target = $region12
      $region11: #{tpu_custom_call.1} parent=5 // pred_region
        %s101 = ssub.s32 %s14, 1
        // Predicated region
        $region13: #{tpu_custom_call.1} parent=11 // pred_check
          %p102 = pneg %p35
        $region14: #{tpu_custom_call.1} parent=11 // pred_check_branch
          %104 = sbr.rel (%p102) target = $region16
        $region15: #{tpu_custom_call.1} parent=11 // pred_region
          _
        $region16: #{tpu_custom_call.1} parent=11 // pred_fallthru
          _
      $region12: #{tpu_custom_call.1} parent=5 // pred_fallthru
        _
      %p105 = scmp.lt.s32.totalorder %s14, 4
      // Predicated region
      $region17: #{tpu_custom_call.1} parent=5 // pred_check
        %p106 = pneg %p105
      $region18: #{tpu_custom_call.1} parent=5 // pred_check_branch
        %108 = sbr.rel (%p106) target = $region20
      $region19: #{tpu_custom_call.1} parent=5 // pred_region
        // Predicated region
        $region21: #{tpu_custom_call.1} parent=19 // pred_check
          %p109 = pneg %p55
        $region22: #{tpu_custom_call.1} parent=19 // pred_check_branch
          %111 = sbr.rel (%p109) target = $region24
        $region23: #{tpu_custom_call.1} parent=19 // pred_region
          %s112 = sand.u32 %s45, 1
          %s113 = scalar_lea.sflag [#allocation3], %s112
          %s114 = sand.u32 %s45, 1
          %s115 = smul.addr %s114, 4
          %s116 = scalar_lea.vmem [#allocation2], %s115
          %s117 = smul.u32 2, %s14
          %s118 = ssub.s32 9, %s117
          %p119 = scmp.lt.s32.totalorder %s118, 2
          %s120 = scalar_select %p119, %s118, 2
          %s121 = smul.u32 2, %s120
          %s122 = ssub.s32 4, %s121
          %s123 = sshll.u32 %s122, 4
          %124 = vsyncadd %s113, %s123
          %p125 = scmp.ne.s32.totalorder 0, %s121
          %s126 = smul.addr %s117, 2
          %s127 = scalar_lea.hbm %s1, %s126
          %s128 = smul.u32 2, %s120
          %s129 = sshll.u32 %s127, 4
          %s130 = int_to_ptr.hbm [resolvable:$true] %s129
          %s131 = sshll.u32 %s116, 4
          %s132 = int_to_ptr.vmem [resolvable:$true] %s131
          %s133 = sshll.u32 %s128, 4
          %137 = dma.hbm_to_vmem [thread:$0]  (%p125), %s130, %s133, %s132, %s113, 32, 32, 2
        $region24: #{tpu_custom_call.1} parent=19 // pred_fallthru
          _
      $region20: #{tpu_custom_call.1} parent=5 // pred_fallthru
        _
      %p138 = scmp.le.s32.totalorder 1, %s14
      %p139 = scmp.lt.s32.totalorder %s14, 5
      %p140 = pnand %p138, %p139
      %p141 = pneg %p140
      // Predicated region
      $region25: #{tpu_custom_call.1} parent=5 // pred_check
        _
      $region26: #{tpu_custom_call.1} parent=5 // pred_check_branch
        %143 = sbr.rel (%p140) target = $region28
      $region27: #{tpu_custom_call.1} parent=5 // pred_region
        %s144 = ssub.s32 %s14, 1
        %s145 = sand.u32 %s48, 1
        %s146 = scalar_lea.sflag [#allocation3], %s145
        %s147 = sand.u32 %s48, 1
        %s148 = smul.addr %s147, 4
        %s149 = scalar_lea.vmem [#allocation2], %s148
        // Predicated region
        $region29: #{tpu_custom_call.1} parent=27 // pred_check
          %p150 = pneg %p61
        $region30: #{tpu_custom_call.1} parent=27 // pred_check_branch
          %152 = sbr.rel (%p150) target = $region32
        $region31: #{tpu_custom_call.1} parent=27 // pred_region
          %154 = dma.done %s146, 64
        $region32: #{tpu_custom_call.1} parent=27 // pred_fallthru
          _
        %p155 = pneg %p35
        %p156 = pneg %p32
        %s157 = sand.u32 %s48, 1
        %s158 = scalar_lea.sflag [#allocation3], %s157
        %s159 = sand.u32 %s48, 1
        %s160 = smul.addr %s159, 4
        %s161 = scalar_lea.vmem [#allocation2], %s160
        %p162 = pneg %p61
        %p163 = pneg %p58
        %p164 = pneg %p87
        %p165 = pneg %p84
        %s166 = sand.u32 %s74, 1
        %s167 = scalar_lea.sflag [#allocation4], %s166
        %s168 = sand.u32 %s74, 1
        %s169 = smul.addr %s168, 2
        %s170 = scalar_lea.vmem [#allocation5], %s169
        %s171 = smul.u32 2, %s19
        %s172 = ssub.s32 9, %s171
        %p173 = scmp.lt.s32.totalorder %s172, 2
        %s174 = scalar_select %p173, %s172, 2
        %s175 = smul.u32 2, %s174
        %v176 = vld [vmem:[%s149] sm:$0x3]
        %v177 = vld [vmem:[%s149 + $0x2] sm:$0x3]
        %v178 = vstv %s19
        %v179 = vld [vmem:[%s0] sm:$0x3]
        %vm180 = vcmp.lt.s32.totalorder %v178, %v179
        %v181 = vsel %vm180, 1, 0
        %182 = vset.pattern.permute.xlu0 0
        %183 = vperm.xlu0 %182, %v181
        %v184 = vpop.permute.xlu0 %183
        %vm185 = vcmp.eq.s32.totalorder %v184, 1
        %v186 = vsel %vm185, %v176, 0.0
        %vm187 = vcmask 254976
        %188 = vst.msk [vmem:[%s170] sm:$0x3] %vm187, %v186
        %v189 = vsel %vm185, %v177, 0.0
        %191 = vrot.lane.b32.xlu0 %v189, 32
        %v192 = vpop.permute.xlu0 %191
        %vm194 = vcmask 517376
        %195 = vst.msk [vmem:[%s170] sm:$0x3] %vm194, %v192
        %s196 = sand.u32 %s74, 1
        %s197 = scalar_lea.sflag [#allocation4], %s196
        %s198 = sand.u32 %s74, 1
        %s199 = smul.addr %s198, 2
        %s200 = scalar_lea.vmem [#allocation5], %s199
        // Predicated region
        $region33: #{tpu_custom_call.1} parent=27 // pred_check
          %p201 = pneg %p84
        $region34: #{tpu_custom_call.1} parent=27 // pred_check_branch
          %203 = sbr.rel (%p201) target = $region36
        $region35: #{tpu_custom_call.1} parent=27 // pred_region
          %205 = vsyncadd %s197, 0
          %s206 = smul.addr %s19, 2
          %s207 = scalar_lea.hbm %s2, %s206
          %s209 = sshll.u32 %s200, 4
          %s210 = int_to_ptr.vmem [resolvable:$true] %s209
          %s211 = sshll.u32 %s207, 4
          %s212 = int_to_ptr.hbm [resolvable:$true] %s211
          %214 = dma.vmem_to_hbm [thread:$0]  %s210, 32, %s212, %s197
        $region36: #{tpu_custom_call.1} parent=27 // pred_fallthru
          _
      $region28: #{tpu_custom_call.1} parent=5 // pred_fallthru
        _
      %p215 = scmp.le.s32.totalorder 2, %s14
      // Predicated region
      $region37: #{tpu_custom_call.1} parent=5 // pred_check
        %p216 = pneg %p215
      $region38: #{tpu_custom_call.1} parent=5 // pred_check_branch
        %218 = sbr.rel (%p216) target = $region40
      $region39: #{tpu_custom_call.1} parent=5 // pred_region
        %s219 = ssub.s32 %s14, 2
        // Predicated region
        $region41: #{tpu_custom_call.1} parent=39 // pred_check
          %p220 = pneg %p90
        $region42: #{tpu_custom_call.1} parent=39 // pred_check_branch
          %222 = sbr.rel (%p220) target = $region44
        $region43: #{tpu_custom_call.1} parent=39 // pred_region
          %s223 = sand.u32 %s75, 1
          %s224 = scalar_lea.sflag [#allocation4], %s223
          %s225 = sand.u32 %s75, 1
          %s226 = smul.addr %s225, 2
          %s227 = scalar_lea.vmem [#allocation5], %s226
          %229 = dma.done %s224, 32
        $region44: #{tpu_custom_call.1} parent=39 // pred_fallthru
          _
      $region40: #{tpu_custom_call.1} parent=5 // pred_fallthru
        _
    $region6: #{tpu_custom_call.1} parent=1 // loop_footer
      %s18 = sadd.s32 1, %s14
    $region7: #{tpu_custom_call.1} parent=1 // loop_footer_branch
      %13 = sbr.rel target = $region3
    $region8: #{tpu_custom_call.1} parent=1 // loop_exit
      _
    %230 = vsyncpa [#allocation3], 1
    %s231 = scalar_lea.sflag [#allocation3], 1
    %232 = vsyncpa %s231, 1
    %233 = vsyncpa [#allocation4], 1
    %s234 = scalar_lea.sflag [#allocation4], 1
    %235 = vsyncpa %s234, 1

</llo_original>
